<compile_context>
chip_gen: v6e
topology: v6e:2x2x1
jax: 0.10.0
libtpu: 0.0.40
codegen_flags: <defaults>
</compile_context>

<pallas_src>
import jax
import jax.numpy as jnp
from jax import lax
from jax.experimental import pallas as pl
from jax.experimental.pallas import tpu as pltpu


def _round_up(x, m):
    return (x + m - 1) // m * m


def _cdiv(a, b):
    return -(-a // b)


def _lane_pad(c):
    # Last-dim lane padding: any block occupies a multiple of 128 lanes in VMEM.
    return _round_up(max(int(c), 1), 128)


def _make_kernel(num_layers):
    """Build a kernel for a fixed number of MLP layers.

    Ref order: xi, xj, (W1, b1, ..., WL, bL), Wb, out
    """

    def kernel(xi_ref, xj_ref, *refs):
        out_ref = refs[-1]
        wb_ref = refs[-2]

        xi = xi_ref[...]
        xj = xj_ref[...]

        for l in range(num_layers):
            w = refs[2 * l][...]                          # [C_in, C_out]
            b = refs[2 * l + 1][...].astype(jnp.float32)  # [1, C_out]
            # Dot operands follow the *weight* dtype (bf16 fast path when the
            # wrapper stores params in bf16); accumulate + bias + relu in f32.
            yi = jnp.dot(xi.astype(w.dtype), w, preferred_element_type=jnp.float32)
            yj = jnp.dot(xj.astype(w.dtype), w, preferred_element_type=jnp.float32)
            xi = jnp.maximum(yi + b, 0.0)
            xj = jnp.maximum(yj + b, 0.0)
            # dropout: identity (eval mode)

        # Bilinear score: sum((x_i @ Wb) * x_j, axis=-1)
        xb = jnp.dot(xi.astype(wb_ref.dtype), wb_ref[...],
                     preferred_element_type=jnp.float32)  # [tile_n, H] f32
        prod = xb * xj                                    # [tile_n, H] f32

        # Reduce over channels AND land the scores lane-dense as (1, tile_n)
        # with one tiny MXU matmul: ones(1,H) contracted against prod over H
        # (an "NT" dot_general).  Keeps the output store unmasked / lane-dense.
        ones_row = jnp.ones((1, prod.shape[1]), jnp.float32)
        scores = lax.dot_general(
            ones_row, prod,
            dimension_numbers=(((1,), (1,)), ((), ())),
            preferred_element_type=jnp.float32)           # (1, tile_n)
        out_ref[...] = scores.astype(out_ref.dtype)

    return kernel


def mlp_bil_predictor(x_i, x_j, weights, biases, w_bilin, *,
                      tile_n=None, compute_dtype=None):
    """weights: list of [C_in, C_out] (already transposed from torch's [out,in]).
       biases:  list of [C_out].
       w_bilin: [H, H] (already transposed).
       compute_dtype: optional storage dtype (e.g. jnp.bfloat16) for the
       inputs / weights / w_bilin fed to the MXU; accumulation stays f32."""
    num_layers = len(weights)
    n, c_in = x_i.shape
    assert x_j.shape == x_i.shape

    # Optional bf16 storage (halves HBM traffic, bf16 MXU path on v6e/v7x).
    if compute_dtype is not None:
        x_i = x_i.astype(compute_dtype)
        x_j = x_j.astype(compute_dtype)
        weights = [w.astype(compute_dtype) for w in weights]
        w_bilin = w_bilin.astype(compute_dtype)
        # biases stay f32: bias add / relu are done in f32 inside the kernel.

    in_itemsize = jnp.dtype(x_i.dtype).itemsize
    c_max = max([c_in] + [int(w.shape[1]) for w in weights])

    # ---- tile selection (lane-padding-aware VMEM model) -------------------
    # Per-row VMEM bytes at a given tile_n:
    #   * x_i / x_j input blocks: 2 streams x 2 pipeline buffers, each
    #     lane-padded to 128 lanes in the input dtype.
    #   * f32 temporaries inside the kernel (per-stream activations, xb, prod,
    #     ...): ~6 live [tile_n, lane_pad(c_max)] f32 arrays.
    bytes_per_row = (2 * 2 * _lane_pad(c_in) * in_itemsize
                     + 6 * _lane_pad(c_max) * 4)
    if tile_n is None:
        budget_bytes = 24 * 1024 * 1024      # per-step cap, safe on v7x (64 MiB)
        cap = max(128, (budget_bytes // bytes_per_row) // 128 * 128)
        cap = min(cap, 4096)                 # diminishing returns past ~4K rows
        # >= 2 grid steps when possible (v7x has 2 TensorCores).
        tile_n = min(cap, _round_up(_cdiv(n, 2), 128))
    tile_n = max(128, _round_up(int(tile_n), 128))

    # Even number of grid steps when the grid has >1 step (v7x dual-TC balance).
    grid_steps = _cdiv(n, tile_n)
    if grid_steps > 1:
        grid_steps = _round_up(grid_steps, 2)
    n_pad = grid_steps * tile_n

    if n_pad != n:
        pad = ((0, n_pad - n), (0, 0))
        x_i = jnp.pad(x_i, pad)
        x_j = jnp.pad(x_j, pad)

    # Biases as [1, C_out] so they broadcast cleanly inside the kernel.
    biases2d = [b.astype(jnp.float32).reshape(1, -1) for b in biases]

    kernel = _make_kernel(num_layers)

    # x_i / x_j are tiled over N; weights/biases are whole-array resident blocks.
    xi_spec = pl.BlockSpec((tile_n, c_in), lambda i: (i, 0))
    xj_spec = pl.BlockSpec((tile_n, c_in), lambda i: (i, 0))
    param_specs = []
    for w, b in zip(weights, biases2d):
        param_specs.append(pl.BlockSpec(w.shape, lambda i: (0, 0)))
        param_specs.append(pl.BlockSpec(b.shape, lambda i: (0, 0)))
    param_specs.append(pl.BlockSpec(w_bilin.shape, lambda i: (0, 0)))

    # Explicit scoped-VMEM limit: per-step footprint + params + headroom.
    param_bytes = sum(int(a.size) * jnp.dtype(a.dtype).itemsize
                      for a in list(weights) + biases2d + [w_bilin])
    vmem_limit = min(48 * 1024 * 1024,
                     tile_n * bytes_per_row + 4 * param_bytes + 2 * 1024 * 1024)

    # Advisory cost estimate (memory/overhead-bound kernel, tiny contraction).
    flops = n_pad * (2 * sum(2 * int(w.shape[0]) * int(w.shape[1]) for w in weights)
                     + 2 * int(w_bilin.shape[0]) * int(w_bilin.shape[1])
                     + 2 * int(w_bilin.shape[1]))
    bytes_accessed = (n_pad * (2 * c_in * in_itemsize + 4) + param_bytes)

    out2d = pl.pallas_call(
        kernel,
        out_shape=jax.ShapeDtypeStruct((1, n_pad), jnp.float32),
        grid_spec=pltpu.PrefetchScalarGridSpec(
            num_scalar_prefetch=0,
            grid=(grid_steps,),
            in_specs=[xi_spec, xj_spec] + param_specs,
            # Lane-dense output block: (1, tile_n) along the lane axis.
            out_specs=pl.BlockSpec((1, tile_n), lambda i: (0, i)),
        ),
        compiler_params=pltpu.CompilerParams(
            dimension_semantics=("parallel",),
            vmem_limit_bytes=int(vmem_limit)),
        cost_estimate=pl.CostEstimate(flops=int(flops),
                                      transcendentals=0,
                                      bytes_accessed=int(bytes_accessed)),
    )(x_i, x_j, *[a for wb in zip(weights, biases2d) for a in wb], w_bilin)

    # Pad rows contain relu(b)-derived garbage scores; slice them off.
    return out2d[0, :n]


def reference(x_i, x_j, weights, biases, w_bilin):
    xi, xj = x_i.astype(jnp.float32), x_j.astype(jnp.float32)
    for w, b in zip(weights, biases):
        xi = jax.nn.relu(xi @ w.astype(jnp.float32) + b.astype(jnp.float32))
        xj = jax.nn.relu(xj @ w.astype(jnp.float32) + b.astype(jnp.float32))
    return jnp.sum((xi @ w_bilin.astype(jnp.float32)) * xj, axis=-1)


if __name__ == "__main__":
    # Small shapes consistent with the module's forward:
    # N pairs, in_channels=16, hidden_channels=32, num_layers=2, dropout=0.5 (eval).
    IN_C, HID, NUM_LAYERS = 16, 32, 2

    key = jax.random.PRNGKey(0)
    keys = jax.random.split(key, 4 + 2 * NUM_LAYERS + 1)

    # Deterministic parameter init (uniform, torch-Linear-like fan-in scaling).
    weights, biases = [], []
    dims = [IN_C] + [HID] * NUM_LAYERS
    for l in range(NUM_LAYERS):
        fan_in = dims[l]
        bound = 1.0 / jnp.sqrt(fan_in)
        w = jax.random.uniform(keys[4 + 2 * l], (dims[l], dims[l + 1]),
                               minval=-bound, maxval=bound, dtype=jnp.float32)
        b = jax.random.uniform(keys[5 + 2 * l], (dims[l + 1],),
                               minval=-bound, maxval=bound, dtype=jnp.float32)
        weights.append(w)
        biases.append(b)
    bound = 1.0 / jnp.sqrt(HID)
    w_bilin = jax.random.uniform(keys[-1], (HID, HID),
                                 minval=-bound, maxval=bound, dtype=jnp.float32)

    # Case 1: tiny N (single padded tile).
    N1 = 8
    x_i1 = jax.random.normal(keys[0], (N1, IN_C), dtype=jnp.float32)
    x_j1 = jax.random.normal(keys[1], (N1, IN_C), dtype=jnp.float32)
    out1 = jax.block_until_ready(mlp_bil_predictor(x_i1, x_j1, weights, biases, w_bilin))
    ref1 = reference(x_i1, x_j1, weights, biases, w_bilin)
    assert out1.shape == (N1,)
    assert jnp.allclose(out1, ref1, atol=1e-4, rtol=1e-4), (out1, ref1)

    # Case 2: N not a multiple of the tile -> exercises padding + multi-step grid.
    N2 = 300
    x_i2 = jax.random.normal(keys[2], (N2, IN_C), dtype=jnp.float32)
    x_j2 = jax.random.normal(keys[3], (N2, IN_C), dtype=jnp.float32)
    out2 = jax.block_until_ready(mlp_bil_predictor(x_i2, x_j2, weights, biases, w_bilin))
    ref2 = reference(x_i2, x_j2, weights, biases, w_bilin)
    assert out2.shape == (N2,)
    assert jnp.allclose(out2, ref2, atol=1e-4, rtol=1e-4), (out2, ref2)

    # Case 3: bf16 storage path (inputs + weights bf16, f32 accumulation).
    out3 = jax.block_until_ready(
        mlp_bil_predictor(x_i2, x_j2, weights, biases, w_bilin,
                          compute_dtype=jnp.bfloat16))
    # Reference on the same bf16-quantized inputs/params (f32 math).
    ref3 = reference(x_i2.astype(jnp.bfloat16), x_j2.astype(jnp.bfloat16),
                     [w.astype(jnp.bfloat16) for w in weights], biases,
                     w_bilin.astype(jnp.bfloat16))
    assert out3.shape == (N2,)
    assert jnp.allclose(out3, ref3, atol=5e-2, rtol=5e-2), (out3, ref3)

    print("KERNEL_OK")
</pallas_src>

<mosaic_0001>
module attributes {stable_mosaic.version = 11 : i64} {
  func.func @kernel(%arg0: i32, %arg1: memref<128x16xf32, #tpu.memory_space<vmem>>, %arg2: memref<128x16xf32, #tpu.memory_space<vmem>>, %arg3: memref<16x32xf32, #tpu.memory_space<vmem>>, %arg4: memref<1x32xf32, #tpu.memory_space<vmem>>, %arg5: memref<32x32xf32, #tpu.memory_space<vmem>>, %arg6: memref<1x32xf32, #tpu.memory_space<vmem>>, %arg7: memref<32x32xf32, #tpu.memory_space<vmem>>, %arg8: memref<1x128xf32, #tpu.memory_space<vmem>>) attributes {dimension_semantics = [#tpu.dimension_semantics<parallel>], iteration_bounds = array<i64: 1>, scalar_prefetch = 0 : i64, scratch_operands = 0 : i64, tpu.core_type = #tpu.core_type<tc>, window_params = [{transform_indices = @transform_0, window_bounds = array<i64: 128, 16>}, {transform_indices = @transform_1, window_bounds = array<i64: 128, 16>}, {pipeline_mode = #tpu.pipeline_mode<synchronous>, transform_indices = @transform_2, window_bounds = array<i64: 16, 32>}, {pipeline_mode = #tpu.pipeline_mode<synchronous>, transform_indices = @transform_3, window_bounds = array<i64: 1, 32>}, {pipeline_mode = #tpu.pipeline_mode<synchronous>, transform_indices = @transform_4, window_bounds = array<i64: 32, 32>}, {pipeline_mode = #tpu.pipeline_mode<synchronous>, transform_indices = @transform_5, window_bounds = array<i64: 1, 32>}, {pipeline_mode = #tpu.pipeline_mode<synchronous>, transform_indices = @transform_6, window_bounds = array<i64: 32, 32>}, {transform_indices = @transform_7, window_bounds = array<i64: 1, 128>}]} {
    %c0 = arith.constant 0 : index
    %c0_0 = arith.constant 0 : index
    %0 = vector.load %arg1[%c0, %c0_0] : memref<128x16xf32, #tpu.memory_space<vmem>>, vector<128x16xf32>
    %c0_1 = arith.constant 0 : index
    %c0_2 = arith.constant 0 : index
    %1 = vector.load %arg2[%c0_1, %c0_2] : memref<128x16xf32, #tpu.memory_space<vmem>>, vector<128x16xf32>
    %c0_3 = arith.constant 0 : index
    %c0_4 = arith.constant 0 : index
    %2 = vector.load %arg3[%c0_3, %c0_4] : memref<16x32xf32, #tpu.memory_space<vmem>>, vector<16x32xf32>
    %c0_5 = arith.constant 0 : index
    %c0_6 = arith.constant 0 : index
    %3 = vector.load %arg4[%c0_5, %c0_6] : memref<1x32xf32, #tpu.memory_space<vmem>>, vector<1x32xf32>
    %cst = arith.constant dense<0.000000e+00> : vector<128x32xf32>
    %4 = tpu.matmul %0, %2, %cst {dimension_numbers = #tpu.dot_dimension_numbers<[1], [0], [0], [1], [0, 0, 1, 1], [], []>} : vector<128x16xf32>, vector<16x32xf32>, vector<128x32xf32> -> vector<128x32xf32>
    %cst_7 = arith.constant dense<0.000000e+00> : vector<128x32xf32>
    %5 = tpu.matmul %1, %2, %cst_7 {dimension_numbers = #tpu.dot_dimension_numbers<[1], [0], [0], [1], [0, 0, 1, 1], [], []>} : vector<128x16xf32>, vector<16x32xf32>, vector<128x32xf32> -> vector<128x32xf32>
    %6 = vector.broadcast %3 : vector<1x32xf32> to vector<128x32xf32>
    %7 = arith.addf %4, %6 : vector<128x32xf32>
    %cst_8 = arith.constant 0.000000e+00 : f32
    %8 = vector.broadcast %cst_8 : f32 to vector<128x32xf32>
    %9 = arith.maximumf %7, %8 : vector<128x32xf32>
    %10 = vector.broadcast %3 : vector<1x32xf32> to vector<128x32xf32>
    %11 = arith.addf %5, %10 : vector<128x32xf32>
    %cst_9 = arith.constant 0.000000e+00 : f32
    %12 = vector.broadcast %cst_9 : f32 to vector<128x32xf32>
    %13 = arith.maximumf %11, %12 : vector<128x32xf32>
    %c0_10 = arith.constant 0 : index
    %c0_11 = arith.constant 0 : index
    %14 = vector.load %arg5[%c0_10, %c0_11] : memref<32x32xf32, #tpu.memory_space<vmem>>, vector<32x32xf32>
    %c0_12 = arith.constant 0 : index
    %c0_13 = arith.constant 0 : index
    %15 = vector.load %arg6[%c0_12, %c0_13] : memref<1x32xf32, #tpu.memory_space<vmem>>, vector<1x32xf32>
    %cst_14 = arith.constant dense<0.000000e+00> : vector<128x32xf32>
    %16 = tpu.matmul %9, %14, %cst_14 {dimension_numbers = #tpu.dot_dimension_numbers<[1], [0], [0], [1], [0, 0, 1, 1], [], []>} : vector<128x32xf32>, vector<32x32xf32>, vector<128x32xf32> -> vector<128x32xf32>
    %cst_15 = arith.constant dense<0.000000e+00> : vector<128x32xf32>
    %17 = tpu.matmul %13, %14, %cst_15 {dimension_numbers = #tpu.dot_dimension_numbers<[1], [0], [0], [1], [0, 0, 1, 1], [], []>} : vector<128x32xf32>, vector<32x32xf32>, vector<128x32xf32> -> vector<128x32xf32>
    %18 = vector.broadcast %15 : vector<1x32xf32> to vector<128x32xf32>
    %19 = arith.addf %16, %18 : vector<128x32xf32>
    %cst_16 = arith.constant 0.000000e+00 : f32
    %20 = vector.broadcast %cst_16 : f32 to vector<128x32xf32>
    %21 = arith.maximumf %19, %20 : vector<128x32xf32>
    %22 = vector.broadcast %15 : vector<1x32xf32> to vector<128x32xf32>
    %23 = arith.addf %17, %22 : vector<128x32xf32>
    %cst_17 = arith.constant 0.000000e+00 : f32
    %24 = vector.broadcast %cst_17 : f32 to vector<128x32xf32>
    %25 = arith.maximumf %23, %24 : vector<128x32xf32>
    %c0_18 = arith.constant 0 : index
    %c0_19 = arith.constant 0 : index
    %26 = vector.load %arg7[%c0_18, %c0_19] : memref<32x32xf32, #tpu.memory_space<vmem>>, vector<32x32xf32>
    %cst_20 = arith.constant dense<0.000000e+00> : vector<128x32xf32>
    %27 = tpu.matmul %21, %26, %cst_20 {dimension_numbers = #tpu.dot_dimension_numbers<[1], [0], [0], [1], [0, 0, 1, 1], [], []>} : vector<128x32xf32>, vector<32x32xf32>, vector<128x32xf32> -> vector<128x32xf32>
    %28 = arith.mulf %27, %25 : vector<128x32xf32>
    %cst_21 = arith.constant 1.000000e+00 : f32
    %29 = vector.broadcast %cst_21 : f32 to vector<1x32xf32>
    %cst_22 = arith.constant dense<0.000000e+00> : vector<1x128xf32>
    %30 = tpu.matmul %29, %28, %cst_22 {dimension_numbers = #tpu.dot_dimension_numbers<[1], [1], [0], [0], [0, 0, 1, 0], [], []>} : vector<1x32xf32>, vector<128x32xf32>, vector<1x128xf32> -> vector<1x128xf32>
    %c0_23 = arith.constant 0 : index
    %c0_24 = arith.constant 0 : index
    %31 = vector.load %arg8[%c0_23, %c0_24] : memref<1x128xf32, #tpu.memory_space<vmem>>, vector<1x128xf32>
    tpu.vector_store %arg8[%c0_23, %c0_24], %30 {strides = array<i32>} : memref<1x128xf32, #tpu.memory_space<vmem>>, vector<1x128xf32>,
    return
  }
  func.func @transform_0(%arg0: i32) -> (i32, i32) {
    %c0_i32 = arith.constant 0 : i32
    %c0_i32_0 = arith.constant 0 : i32
    return %arg0, %c0_i32 : i32, i32
  }
  func.func @transform_1(%arg0: i32) -> (i32, i32) {
    %c0_i32 = arith.constant 0 : i32
    %c0_i32_0 = arith.constant 0 : i32
    return %arg0, %c0_i32 : i32, i32
  }
  func.func @transform_2(%arg0: i32) -> (i32, i32) {
    %c0_i32 = arith.constant 0 : i32
    %c0_i32_0 = arith.constant 0 : i32
    %c0_i32_1 = arith.constant 0 : i32
    return %c0_i32, %c0_i32_0 : i32, i32
  }
  func.func @transform_3(%arg0: i32) -> (i32, i32) {
    %c0_i32 = arith.constant 0 : i32
    %c0_i32_0 = arith.constant 0 : i32
    %c0_i32_1 = arith.constant 0 : i32
    return %c0_i32, %c0_i32_0 : i32, i32
  }
  func.func @transform_4(%arg0: i32) -> (i32, i32) {
    %c0_i32 = arith.constant 0 : i32
    %c0_i32_0 = arith.constant 0 : i32
    %c0_i32_1 = arith.constant 0 : i32
    return %c0_i32, %c0_i32_0 : i32, i32
  }
  func.func @transform_5(%arg0: i32) -> (i32, i32) {
    %c0_i32 = arith.constant 0 : i32
    %c0_i32_0 = arith.constant 0 : i32
    %c0_i32_1 = arith.constant 0 : i32
    return %c0_i32, %c0_i32_0 : i32, i32
  }
  func.func @transform_6(%arg0: i32) -> (i32, i32) {
    %c0_i32 = arith.constant 0 : i32
    %c0_i32_0 = arith.constant 0 : i32
    %c0_i32_1 = arith.constant 0 : i32
    return %c0_i32, %c0_i32_0 : i32, i32
  }
  func.func @transform_7(%arg0: i32) -> (i32, i32) {
    %c0_i32 = arith.constant 0 : i32
    %c0_i32_0 = arith.constant 0 : i32
    return %c0_i32, %arg0 : i32, i32
  }
}

</mosaic_0001>

<llo_original>
// kernel: tpu_custom_call.1
$region0: #{tpu_custom_call.1}
  #allocation0 [shape = 'u32[]', space=smem, size = 0x4, offset = 0x4, fixed_abs, tag = 'smem constant byte address 0x4 - core index']
  #allocation1 [shape = 'u32[144,128]{1,0:T(1,128)}', space=vmem, size = 0x12000, scoped, tag = 'internal scratch']
  %s0 = inlined_call_operand.vmem [shape: f32[128,16], index: 0, kind: input, shape index: {}]
  %s1 = inlined_call_operand.vmem [shape: f32[128,16], index: 1, kind: input, shape index: {}]
  %s2 = inlined_call_operand.vmem [shape: f32[16,32], index: 2, kind: input, shape index: {}]
  %s3 = inlined_call_operand.vmem [shape: f32[1,32], index: 3, kind: input, shape index: {}]
  %s4 = inlined_call_operand.vmem [shape: f32[32,32], index: 4, kind: input, shape index: {}]
  %s5 = inlined_call_operand.vmem [shape: f32[1,32], index: 5, kind: input, shape index: {}]
  %s6 = inlined_call_operand.vmem [shape: f32[32,32], index: 6, kind: input, shape index: {}]
  %s7 = inlined_call_operand.hbm [shape: f32[1,128], index: 7, kind: output, shape index: {}]
  %s8 = sld [smem:[#allocation0]]
  $region38: #{tpu_custom_call.1} parent=0
    _
  %s10 = ssub.s32 1, %s8
  %s11 = scalar_select 0, %s10, %s8
  $region1: #{tpu_custom_call.1} parent=0
    #allocation2 [shape = 'u8[512]{0}', space=vmem, size = 0x400, scoped, tag = 'output window, operand 0, single buffered']
    #allocation3 [shape = 's32[1]{0}', space=sflag, size = 0x4, scoped, tag = 'scoped memory for tpu_custom_call.1']
    %12 = vsyncpa [#allocation3], 0
    // Predicated region
    $region2: #{tpu_custom_call.1} parent=1 // pred_check
      _
    $region3: #{tpu_custom_call.1} parent=1 // pred_check_branch
      %14 = sbr.rel (0) target = $region5
    $region4: #{tpu_custom_call.1} parent=1 // pred_region
      _
    $region5: #{tpu_custom_call.1} parent=1 // pred_fallthru
      _
    // Predicated region
    $region6: #{tpu_custom_call.1} parent=1 // pred_check
      _
    $region7: #{tpu_custom_call.1} parent=1 // pred_check_branch
      %16 = sbr.rel (0) target = $region9
    $region8: #{tpu_custom_call.1} parent=1 // pred_region
      _
    $region9: #{tpu_custom_call.1} parent=1 // pred_fallthru
      _
    // Predicated region
    $region10: #{tpu_custom_call.1} parent=1 // pred_check
      _
    $region11: #{tpu_custom_call.1} parent=1 // pred_check_branch
      %18 = sbr.rel (0) target = $region13
    $region12: #{tpu_custom_call.1} parent=1 // pred_region
      _
    $region13: #{tpu_custom_call.1} parent=1 // pred_fallthru
      _
    // Predicated region
    $region14: #{tpu_custom_call.1} parent=1 // pred_check
      _
    $region15: #{tpu_custom_call.1} parent=1 // pred_check_branch
      %20 = sbr.rel (0) target = $region17
    $region16: #{tpu_custom_call.1} parent=1 // pred_region
      _
    $region17: #{tpu_custom_call.1} parent=1 // pred_fallthru
      _
    // Predicated region
    $region18: #{tpu_custom_call.1} parent=1 // pred_check
      _
    $region19: #{tpu_custom_call.1} parent=1 // pred_check_branch
      %22 = sbr.rel (0) target = $region21
    $region20: #{tpu_custom_call.1} parent=1 // pred_region
      _
    $region21: #{tpu_custom_call.1} parent=1 // pred_fallthru
      _
    // Predicated region
    $region22: #{tpu_custom_call.1} parent=1 // pred_check
      _
    $region23: #{tpu_custom_call.1} parent=1 // pred_check_branch
      %24 = sbr.rel (0) target = $region25
    $region24: #{tpu_custom_call.1} parent=1 // pred_region
      _
    $region25: #{tpu_custom_call.1} parent=1 // pred_fallthru
      _
    // Predicated region
    $region26: #{tpu_custom_call.1} parent=1 // pred_check
      _
    $region27: #{tpu_custom_call.1} parent=1 // pred_check_branch
      %26 = sbr.rel (0) target = $region29
    $region28: #{tpu_custom_call.1} parent=1 // pred_region
      _
    $region29: #{tpu_custom_call.1} parent=1 // pred_fallthru
      _
    %v27 = vld [vmem:[%s0] sm:$0xff]
    %v28 = vld [vmem:[%s0 + $0x8] sm:$0xff]
    %v29 = vld [vmem:[%s0 + $0x10] sm:$0xff]
    %v30 = vld [vmem:[%s0 + $0x18] sm:$0xff]
    %v31 = vld [vmem:[%s0 + $0x20] sm:$0xff]
    %v32 = vld [vmem:[%s0 + $0x28] sm:$0xff]
    %v33 = vld [vmem:[%s0 + $0x30] sm:$0xff]
    %v34 = vld [vmem:[%s0 + $0x38] sm:$0xff]
    %v35 = vld [vmem:[%s0 + $0x40] sm:$0xff]
    %v36 = vld [vmem:[%s0 + $0x48] sm:$0xff]
    %v37 = vld [vmem:[%s0 + $0x50] sm:$0xff]
    %v38 = vld [vmem:[%s0 + $0x58] sm:$0xff]
    %v39 = vld [vmem:[%s0 + $0x60] sm:$0xff]
    %v40 = vld [vmem:[%s0 + $0x68] sm:$0xff]
    %v41 = vld [vmem:[%s0 + $0x70] sm:$0xff]
    %v42 = vld [vmem:[%s0 + $0x78] sm:$0xff]
    %v43 = vld [vmem:[%s1] sm:$0xff]
    %v44 = vld [vmem:[%s1 + $0x8] sm:$0xff]
    %v45 = vld [vmem:[%s1 + $0x10] sm:$0xff]
    %v46 = vld [vmem:[%s1 + $0x18] sm:$0xff]
    %v47 = vld [vmem:[%s1 + $0x20] sm:$0xff]
    %v48 = vld [vmem:[%s1 + $0x28] sm:$0xff]
    %v49 = vld [vmem:[%s1 + $0x30] sm:$0xff]
    %v50 = vld [vmem:[%s1 + $0x38] sm:$0xff]
    %v51 = vld [vmem:[%s1 + $0x40] sm:$0xff]
    %v52 = vld [vmem:[%s1 + $0x48] sm:$0xff]
    %v53 = vld [vmem:[%s1 + $0x50] sm:$0xff]
    %v54 = vld [vmem:[%s1 + $0x58] sm:$0xff]
    %v55 = vld [vmem:[%s1 + $0x60] sm:$0xff]
    %v56 = vld [vmem:[%s1 + $0x68] sm:$0xff]
    %v57 = vld [vmem:[%s1 + $0x70] sm:$0xff]
    %v58 = vld [vmem:[%s1 + $0x78] sm:$0xff]
    %v59 = vld [vmem:[%s2] sm:$0xff]
    %v60 = vld [vmem:[%s2 + $0x8] sm:$0xff]
    %v61 = vld [vmem:[%s3] sm:$0x1]
    %v63 = vlaneseq
    %v64 = vshrl.u32 %v63, 7
    %v65 = vsub.s32 0, %v64
    %v66 = vrot.slane %v61, %v65
    %vm68 = vcmask 130048
    %v70 = vsel %vm68, %v27, 0
    %v73 = vsel %vm68, %v28, 0
    %v76 = vsel %vm68, %v29, 0
    %v79 = vsel %vm68, %v30, 0
    %v82 = vsel %vm68, %v31, 0
    %v85 = vsel %vm68, %v32, 0
    %v88 = vsel %vm68, %v33, 0
    %v91 = vsel %vm68, %v34, 0
    %v94 = vsel %vm68, %v35, 0
    %v97 = vsel %vm68, %v36, 0
    %v100 = vsel %vm68, %v37, 0
    %v103 = vsel %vm68, %v38, 0
    %v106 = vsel %vm68, %v39, 0
    %v109 = vsel %vm68, %v40, 0
    %v112 = vsel %vm68, %v41, 0
    %v115 = vsel %vm68, %v42, 0
    %117 = vmatprep.subr.mxu0 0.0
    %118 = vmatpush1.msra.mxu0 0.0
    %119 = vmatprep.subr.mxu0 0.0
    %120 = vmatpush1.msra.mxu0 0.0
    %121 = vmatprep.subr.mxu0 0.0
    %122 = vmatpush1.msra.mxu0 0.0
    %123 = vmatprep.subr.mxu0 0.0
    %124 = vmatpush1.msra.mxu0 0.0
    %125 = vmatprep.subr.mxu0 0.0
    %126 = vmatpush1.msra.mxu0 0.0
    %127 = vmatprep.subr.mxu0 0.0
    %128 = vmatpush1.msra.mxu0 0.0
    %129 = vmatprep.subr.mxu0 0.0
    %130 = vmatpush1.msra.mxu0 0.0
    %131 = vmatprep.subr.mxu0 0.0
    %132 = vmatpush1.msra.mxu0 0.0
    %133 = vmatprep.subr.mxu0 0.0
    %134 = vmatpush1.msra.mxu0 0.0
    %135 = vmatprep.subr.mxu0 0.0
    %136 = vmatpush1.msra.mxu0 0.0
    %137 = vmatprep.subr.mxu0 0.0
    %138 = vmatpush1.msra.mxu0 0.0
    %139 = vmatprep.subr.mxu0 0.0
    %140 = vmatpush1.msra.mxu0 0.0
    %141 = vmatprep.subr.mxu0 0.0
    %142 = vmatpush1.msra.mxu0 0.0
    %143 = vmatprep.subr.mxu0 0.0
    %144 = vmatpush1.msra.mxu0 0.0
    %145 = vmatprep.subr.mxu0 0.0
    %146 = vmatpush1.msra.mxu0 %v60
    %147 = vmatprep.subr.mxu0 0.0
    %148 = vmatpush1.msra.mxu0 %v59
    %149 = vmatprep.subr.mxu0 0.0
    %150 = vmatpush2.msra.mxu0 0.0
    %151 = vmatprep.subr.mxu0 0.0
    %152 = vmatpush2.msra.mxu0 0.0
    %153 = vmatprep.subr.mxu0 0.0
    %154 = vmatpush2.msra.mxu0 0.0
    %155 = vmatprep.subr.mxu0 0.0
    %156 = vmatpush2.msra.mxu0 0.0
    %157 = vmatprep.subr.mxu0 0.0
    %158 = vmatpush2.msra.mxu0 0.0
    %159 = vmatprep.subr.mxu0 0.0
    %160 = vmatpush2.msra.mxu0 0.0
    %161 = vmatprep.subr.mxu0 0.0
    %162 = vmatpush2.msra.mxu0 0.0
    %163 = vmatprep.subr.mxu0 0.0
    %164 = vmatpush2.msra.mxu0 0.0
    %165 = vmatprep.subr.mxu0 0.0
    %166 = vmatpush2.msra.mxu0 0.0
    %167 = vmatprep.subr.mxu0 0.0
    %168 = vmatpush2.msra.mxu0 0.0
    %169 = vmatprep.subr.mxu0 0.0
    %170 = vmatpush2.msra.mxu0 0.0
    %171 = vmatprep.subr.mxu0 0.0
    %172 = vmatpush2.msra.mxu0 0.0
    %173 = vmatprep.subr.mxu0 0.0
    %174 = vmatpush2.msra.mxu0 0.0
    %175 = vmatprep.subr.mxu0 0.0
    %176 = vmatpush2.msra.mxu0 0.0
    %177 = vmatprep.subr.mxu0 0.0
    %178 = vmatpush2.msra.mxu0 0.0
    %179 = vmatprep.subr.mxu0 0.0
    %180 = vmatpush2.msra.mxu0 0.0
    %181 = vmatprep.mubr.f32.mxu0 0.0
    %182 = vmatmul.mubr.f32.gmra.mxu0 %v70
    %v183 = vpop.f32.mrf.mxu0
    %v184 = vadd.f32 %v66, %v183
    %v185 = vpop.f32.mrf.mxu0
    %186 = vmatprep.mubr.f32.mxu0 0.0
    %187 = vmatmul.mubr.f32.gmra.mxu0 %v73
    %v188 = vpop.f32.mrf.mxu0
    %v189 = vadd.f32 %v66, %v188
    %v190 = vpop.f32.mrf.mxu0
    %191 = vmatprep.mubr.f32.mxu0 0.0
    %192 = vmatmul.mubr.f32.gmra.mxu0 %v76
    %v193 = vpop.f32.mrf.mxu0
    %v194 = vadd.f32 %v66, %v193
    %v195 = vpop.f32.mrf.mxu0
    %196 = vmatprep.mubr.f32.mxu0 0.0
    %197 = vmatmul.mubr.f32.gmra.mxu0 %v79
    %v198 = vpop.f32.mrf.mxu0
    %v199 = vadd.f32 %v66, %v198
    %v200 = vpop.f32.mrf.mxu0
    %201 = vmatprep.mubr.f32.mxu0 0.0
    %202 = vmatmul.mubr.f32.gmra.mxu0 %v82
    %v203 = vpop.f32.mrf.mxu0
    %v204 = vadd.f32 %v66, %v203
    %v205 = vpop.f32.mrf.mxu0
    %206 = vmatprep.mubr.f32.mxu0 0.0
    %207 = vmatmul.mubr.f32.gmra.mxu0 %v85
    %v208 = vpop.f32.mrf.mxu0
    %v209 = vadd.f32 %v66, %v208
    %v210 = vpop.f32.mrf.mxu0
    %211 = vmatprep.mubr.f32.mxu0 0.0
    %212 = vmatmul.mubr.f32.gmra.mxu0 %v88
    %v213 = vpop.f32.mrf.mxu0
    %v214 = vadd.f32 %v66, %v213
    %v215 = vpop.f32.mrf.mxu0
    %216 = vmatprep.mubr.f32.mxu0 0.0
    %217 = vmatmul.mubr.f32.gmra.mxu0 %v91
    %v218 = vpop.f32.mrf.mxu0
    %v219 = vadd.f32 %v66, %v218
    %v220 = vpop.f32.mrf.mxu0
    %221 = vmatprep.mubr.f32.mxu0 0.0
    %222 = vmatmul.mubr.f32.gmra.mxu0 %v94
    %v223 = vpop.f32.mrf.mxu0
    %v224 = vadd.f32 %v66, %v223
    %v225 = vpop.f32.mrf.mxu0
    %226 = vmatprep.mubr.f32.mxu0 0.0
    %227 = vmatmul.mubr.f32.gmra.mxu0 %v97
    %v228 = vpop.f32.mrf.mxu0
    %v229 = vadd.f32 %v66, %v228
    %v230 = vpop.f32.mrf.mxu0
    %231 = vmatprep.mubr.f32.mxu0 0.0
    %232 = vmatmul.mubr.f32.gmra.mxu0 %v100
    %v233 = vpop.f32.mrf.mxu0
    %v234 = vadd.f32 %v66, %v233
    %v235 = vpop.f32.mrf.mxu0
    %236 = vmatprep.mubr.f32.mxu0 0.0
    %237 = vmatmul.mubr.f32.gmra.mxu0 %v103
    %v238 = vpop.f32.mrf.mxu0
    %v239 = vadd.f32 %v66, %v238
    %v240 = vpop.f32.mrf.mxu0
    %241 = vmatprep.mubr.f32.mxu0 0.0
    %242 = vmatmul.mubr.f32.gmra.mxu0 %v106
    %v243 = vpop.f32.mrf.mxu0
    %v244 = vadd.f32 %v66, %v243
    %v245 = vpop.f32.mrf.mxu0
    %246 = vmatprep.mubr.f32.mxu0 0.0
    %247 = vmatmul.mubr.f32.gmra.mxu0 %v109
    %v248 = vpop.f32.mrf.mxu0
    %v249 = vadd.f32 %v66, %v248
    %v250 = vpop.f32.mrf.mxu0
    %251 = vmatprep.mubr.f32.mxu0 0.0
    %252 = vmatmul.mubr.f32.gmra.mxu0 %v112
    %v253 = vpop.f32.mrf.mxu0
    %v254 = vadd.f32 %v66, %v253
    %v255 = vpop.f32.mrf.mxu0
    %256 = vmatprep.mubr.f32.mxu0 0.0
    %257 = vmatmul.mubr.f32.gmra.mxu0 %v115
    %v258 = vpop.f32.mrf.mxu0
    %v259 = vadd.f32 %v66, %v258
    %v260 = vpop.f32.mrf.mxu0
    %261 = vdwg.mxu0
    %v262 = vmax.f32 %v184, 0.0
    %v263 = vmax.f32 %v189, 0.0
    %v264 = vmax.f32 %v194, 0.0
    %v265 = vmax.f32 %v199, 0.0
    %v266 = vmax.f32 %v204, 0.0
    %v267 = vmax.f32 %v209, 0.0
    %v268 = vmax.f32 %v214, 0.0
    %v269 = vmax.f32 %v219, 0.0
    %v270 = vmax.f32 %v224, 0.0
    %v271 = vmax.f32 %v229, 0.0
    %v272 = vmax.f32 %v234, 0.0
    %v273 = vmax.f32 %v239, 0.0
    %v274 = vmax.f32 %v244, 0.0
    %v275 = vmax.f32 %v249, 0.0
    %v276 = vmax.f32 %v254, 0.0
    %v277 = vmax.f32 %v259, 0.0
    %v279 = vsel %vm68, %v43, 0
    %v282 = vsel %vm68, %v44, 0
    %v285 = vsel %vm68, %v45, 0
    %v288 = vsel %vm68, %v46, 0
    %v291 = vsel %vm68, %v47, 0
    %v294 = vsel %vm68, %v48, 0
    %v297 = vsel %vm68, %v49, 0
    %v300 = vsel %vm68, %v50, 0
    %v303 = vsel %vm68, %v51, 0
    %v306 = vsel %vm68, %v52, 0
    %v309 = vsel %vm68, %v53, 0
    %v312 = vsel %vm68, %v54, 0
    %v315 = vsel %vm68, %v55, 0
    %v318 = vsel %vm68, %v56, 0
    %v321 = vsel %vm68, %v57, 0
    %v324 = vsel %vm68, %v58, 0
    %326 = vmatprep.subr.mxu0 0.0
    %327 = vmatpush1.msra.mxu0 0.0
    %328 = vmatprep.subr.mxu0 0.0
    %329 = vmatpush1.msra.mxu0 0.0
    %330 = vmatprep.subr.mxu0 0.0
    %331 = vmatpush1.msra.mxu0 0.0
    %332 = vmatprep.subr.mxu0 0.0
    %333 = vmatpush1.msra.mxu0 0.0
    %334 = vmatprep.subr.mxu0 0.0
    %335 = vmatpush1.msra.mxu0 0.0
    %336 = vmatprep.subr.mxu0 0.0
    %337 = vmatpush1.msra.mxu0 0.0
    %338 = vmatprep.subr.mxu0 0.0
    %339 = vmatpush1.msra.mxu0 0.0
    %340 = vmatprep.subr.mxu0 0.0
    %341 = vmatpush1.msra.mxu0 0.0
    %342 = vmatprep.subr.mxu0 0.0
    %343 = vmatpush1.msra.mxu0 0.0
    %344 = vmatprep.subr.mxu0 0.0
    %345 = vmatpush1.msra.mxu0 0.0
    %346 = vmatprep.subr.mxu0 0.0
    %347 = vmatpush1.msra.mxu0 0.0
    %348 = vmatprep.subr.mxu0 0.0
    %349 = vmatpush1.msra.mxu0 0.0
    %350 = vmatprep.subr.mxu0 0.0
    %351 = vmatpush1.msra.mxu0 0.0
    %352 = vmatprep.subr.mxu0 0.0
    %353 = vmatpush1.msra.mxu0 0.0
    %354 = vmatprep.subr.mxu0 0.0
    %355 = vmatpush1.msra.mxu0 %v60
    %356 = vmatprep.subr.mxu0 0.0
    %357 = vmatpush1.msra.mxu0 %v59
    %358 = vmatprep.subr.mxu0 0.0
    %359 = vmatpush2.msra.mxu0 0.0
    %360 = vmatprep.subr.mxu0 0.0
    %361 = vmatpush2.msra.mxu0 0.0
    %362 = vmatprep.subr.mxu0 0.0
    %363 = vmatpush2.msra.mxu0 0.0
    %364 = vmatprep.subr.mxu0 0.0
    %365 = vmatpush2.msra.mxu0 0.0
    %366 = vmatprep.subr.mxu0 0.0
    %367 = vmatpush2.msra.mxu0 0.0
    %368 = vmatprep.subr.mxu0 0.0
    %369 = vmatpush2.msra.mxu0 0.0
    %370 = vmatprep.subr.mxu0 0.0
    %371 = vmatpush2.msra.mxu0 0.0
    %372 = vmatprep.subr.mxu0 0.0
    %373 = vmatpush2.msra.mxu0 0.0
    %374 = vmatprep.subr.mxu0 0.0
    %375 = vmatpush2.msra.mxu0 0.0
    %376 = vmatprep.subr.mxu0 0.0
    %377 = vmatpush2.msra.mxu0 0.0
    %378 = vmatprep.subr.mxu0 0.0
    %379 = vmatpush2.msra.mxu0 0.0
    %380 = vmatprep.subr.mxu0 0.0
    %381 = vmatpush2.msra.mxu0 0.0
    %382 = vmatprep.subr.mxu0 0.0
    %383 = vmatpush2.msra.mxu0 0.0
    %384 = vmatprep.subr.mxu0 0.0
    %385 = vmatpush2.msra.mxu0 0.0
    %386 = vmatprep.subr.mxu0 0.0
    %387 = vmatpush2.msra.mxu0 0.0
    %388 = vmatprep.subr.mxu0 0.0
    %389 = vmatpush2.msra.mxu0 0.0
    %390 = vmatprep.mubr.f32.mxu0 0.0
    %391 = vmatmul.mubr.f32.gmra.mxu0 %v279
    %v392 = vpop.f32.mrf.mxu0
    %v393 = vadd.f32 %v66, %v392
    %v394 = vpop.f32.mrf.mxu0
    %395 = vmatprep.mubr.f32.mxu0 0.0
    %396 = vmatmul.mubr.f32.gmra.mxu0 %v282
    %v397 = vpop.f32.mrf.mxu0
    %v398 = vadd.f32 %v66, %v397
    %v399 = vpop.f32.mrf.mxu0
    %400 = vmatprep.mubr.f32.mxu0 0.0
    %401 = vmatmul.mubr.f32.gmra.mxu0 %v285
    %v402 = vpop.f32.mrf.mxu0
    %v403 = vadd.f32 %v66, %v402
    %v404 = vpop.f32.mrf.mxu0
    %405 = vmatprep.mubr.f32.mxu0 0.0
    %406 = vmatmul.mubr.f32.gmra.mxu0 %v288
    %v407 = vpop.f32.mrf.mxu0
    %v408 = vadd.f32 %v66, %v407
    %v409 = vpop.f32.mrf.mxu0
    %410 = vmatprep.mubr.f32.mxu0 0.0
    %411 = vmatmul.mubr.f32.gmra.mxu0 %v291
    %v412 = vpop.f32.mrf.mxu0
    %v413 = vadd.f32 %v66, %v412
    %v414 = vpop.f32.mrf.mxu0
    %415 = vmatprep.mubr.f32.mxu0 0.0
    %416 = vmatmul.mubr.f32.gmra.mxu0 %v294
    %v417 = vpop.f32.mrf.mxu0
    %v418 = vadd.f32 %v66, %v417
    %v419 = vpop.f32.mrf.mxu0
    %420 = vmatprep.mubr.f32.mxu0 0.0
    %421 = vmatmul.mubr.f32.gmra.mxu0 %v297
    %v422 = vpop.f32.mrf.mxu0
    %v423 = vadd.f32 %v66, %v422
    %v424 = vpop.f32.mrf.mxu0
    %425 = vmatprep.mubr.f32.mxu0 0.0
    %426 = vmatmul.mubr.f32.gmra.mxu0 %v300
    %v427 = vpop.f32.mrf.mxu0
    %v428 = vadd.f32 %v66, %v427
    %v429 = vpop.f32.mrf.mxu0
    %430 = vmatprep.mubr.f32.mxu0 0.0
    %431 = vmatmul.mubr.f32.gmra.mxu0 %v303
    %v432 = vpop.f32.mrf.mxu0
    %v433 = vadd.f32 %v66, %v432
    %v434 = vpop.f32.mrf.mxu0
    %435 = vmatprep.mubr.f32.mxu0 0.0
    %436 = vmatmul.mubr.f32.gmra.mxu0 %v306
    %v437 = vpop.f32.mrf.mxu0
    %v438 = vadd.f32 %v66, %v437
    %v439 = vpop.f32.mrf.mxu0
    %440 = vmatprep.mubr.f32.mxu0 0.0
    %441 = vmatmul.mubr.f32.gmra.mxu0 %v309
    %v442 = vpop.f32.mrf.mxu0
    %v443 = vadd.f32 %v66, %v442
    %v444 = vpop.f32.mrf.mxu0
    %445 = vmatprep.mubr.f32.mxu0 0.0
    %446 = vmatmul.mubr.f32.gmra.mxu0 %v312
    %v447 = vpop.f32.mrf.mxu0
    %v448 = vadd.f32 %v66, %v447
    %v449 = vpop.f32.mrf.mxu0
    %450 = vmatprep.mubr.f32.mxu0 0.0
    %451 = vmatmul.mubr.f32.gmra.mxu0 %v315
    %v452 = vpop.f32.mrf.mxu0
    %v453 = vadd.f32 %v66, %v452
    %v454 = vpop.f32.mrf.mxu0
    %455 = vmatprep.mubr.f32.mxu0 0.0
    %456 = vmatmul.mubr.f32.gmra.mxu0 %v318
    %v457 = vpop.f32.mrf.mxu0
    %v458 = vadd.f32 %v66, %v457
    %v459 = vpop.f32.mrf.mxu0
    %460 = vmatprep.mubr.f32.mxu0 0.0
    %461 = vmatmul.mubr.f32.gmra.mxu0 %v321
    %v462 = vpop.f32.mrf.mxu0
    %v463 = vadd.f32 %v66, %v462
    %v464 = vpop.f32.mrf.mxu0
    %465 = vmatprep.mubr.f32.mxu0 0.0
    %466 = vmatmul.mubr.f32.gmra.mxu0 %v324
    %v467 = vpop.f32.mrf.mxu0
    %v468 = vadd.f32 %v66, %v467
    %v469 = vpop.f32.mrf.mxu0
    %470 = vdwg.mxu0
    %v471 = vmax.f32 %v393, 0.0
    %v472 = vmax.f32 %v398, 0.0
    %v473 = vmax.f32 %v403, 0.0
    %v474 = vmax.f32 %v408, 0.0
    %v475 = vmax.f32 %v413, 0.0
    %v476 = vmax.f32 %v418, 0.0
    %v477 = vmax.f32 %v423, 0.0
    %v478 = vmax.f32 %v428, 0.0
    %v479 = vmax.f32 %v433, 0.0
    %v480 = vmax.f32 %v438, 0.0
    %v481 = vmax.f32 %v443, 0.0
    %v482 = vmax.f32 %v448, 0.0
    %v483 = vmax.f32 %v453, 0.0
    %v484 = vmax.f32 %v458, 0.0
    %v485 = vmax.f32 %v463, 0.0
    %v486 = vmax.f32 %v468, 0.0
    %v487 = vld [vmem:[%s4] sm:$0xff]
    %v488 = vld [vmem:[%s4 + $0x8] sm:$0xff]
    %v489 = vld [vmem:[%s4 + $0x10] sm:$0xff]
    %v490 = vld [vmem:[%s4 + $0x18] sm:$0xff]
    %v491 = vld [vmem:[%s5] sm:$0x1]
    %v493 = vlaneseq
    %v494 = vshrl.u32 %v493, 7
    %v495 = vsub.s32 0, %v494
    %v496 = vrot.slane %v491, %v495
    %vm498 = vcmask 261120
    %v500 = vsel %vm498, %v262, 0
    %v503 = vsel %vm498, %v263, 0
    %v506 = vsel %vm498, %v264, 0
    %v509 = vsel %vm498, %v265, 0
    %v512 = vsel %vm498, %v266, 0
    %v515 = vsel %vm498, %v267, 0
    %v518 = vsel %vm498, %v268, 0
    %v521 = vsel %vm498, %v269, 0
    %v524 = vsel %vm498, %v270, 0
    %v527 = vsel %vm498, %v271, 0
    %v530 = vsel %vm498, %v272, 0
    %v533 = vsel %vm498, %v273, 0
    %v536 = vsel %vm498, %v274, 0
    %v539 = vsel %vm498, %v275, 0
    %v542 = vsel %vm498, %v276, 0
    %v545 = vsel %vm498, %v277, 0
    %547 = vmatprep.subr.mxu0 0.0
    %548 = vmatpush1.msra.mxu0 0.0
    %549 = vmatprep.subr.mxu0 0.0
    %550 = vmatpush1.msra.mxu0 0.0
    %551 = vmatprep.subr.mxu0 0.0
    %552 = vmatpush1.msra.mxu0 0.0
    %553 = vmatprep.subr.mxu0 0.0
    %554 = vmatpush1.msra.mxu0 0.0
    %555 = vmatprep.subr.mxu0 0.0
    %556 = vmatpush1.msra.mxu0 0.0
    %557 = vmatprep.subr.mxu0 0.0
    %558 = vmatpush1.msra.mxu0 0.0
    %559 = vmatprep.subr.mxu0 0.0
    %560 = vmatpush1.msra.mxu0 0.0
    %561 = vmatprep.subr.mxu0 0.0
    %562 = vmatpush1.msra.mxu0 0.0
    %563 = vmatprep.subr.mxu0 0.0
    %564 = vmatpush1.msra.mxu0 0.0
    %565 = vmatprep.subr.mxu0 0.0
    %566 = vmatpush1.msra.mxu0 0.0
    %567 = vmatprep.subr.mxu0 0.0
    %568 = vmatpush1.msra.mxu0 0.0
    %569 = vmatprep.subr.mxu0 0.0
    %570 = vmatpush1.msra.mxu0 0.0
    %571 = vmatprep.subr.mxu0 0.0
    %572 = vmatpush1.msra.mxu0 %v490
    %573 = vmatprep.subr.mxu0 0.0
    %574 = vmatpush1.msra.mxu0 %v489
    %575 = vmatprep.subr.mxu0 0.0
    %576 = vmatpush1.msra.mxu0 %v488
    %577 = vmatprep.subr.mxu0 0.0
    %578 = vmatpush1.msra.mxu0 %v487
    %579 = vmatprep.subr.mxu0 0.0
    %580 = vmatpush2.msra.mxu0 0.0
    %581 = vmatprep.subr.mxu0 0.0
    %582 = vmatpush2.msra.mxu0 0.0
    %583 = vmatprep.subr.mxu0 0.0
    %584 = vmatpush2.msra.mxu0 0.0
    %585 = vmatprep.subr.mxu0 0.0
    %586 = vmatpush2.msra.mxu0 0.0
    %587 = vmatprep.subr.mxu0 0.0
    %588 = vmatpush2.msra.mxu0 0.0
    %589 = vmatprep.subr.mxu0 0.0
    %590 = vmatpush2.msra.mxu0 0.0
    %591 = vmatprep.subr.mxu0 0.0
    %592 = vmatpush2.msra.mxu0 0.0
    %593 = vmatprep.subr.mxu0 0.0
    %594 = vmatpush2.msra.mxu0 0.0
    %595 = vmatprep.subr.mxu0 0.0
    %596 = vmatpush2.msra.mxu0 0.0
    %597 = vmatprep.subr.mxu0 0.0
    %598 = vmatpush2.msra.mxu0 0.0
    %599 = vmatprep.subr.mxu0 0.0
    %600 = vmatpush2.msra.mxu0 0.0
    %601 = vmatprep.subr.mxu0 0.0
    %602 = vmatpush2.msra.mxu0 0.0
    %603 = vmatprep.subr.mxu0 0.0
    %604 = vmatpush2.msra.mxu0 0.0
    %605 = vmatprep.subr.mxu0 0.0
    %606 = vmatpush2.msra.mxu0 0.0
    %607 = vmatprep.subr.mxu0 0.0
    %608 = vmatpush2.msra.mxu0 0.0
    %609 = vmatprep.subr.mxu0 0.0
    %610 = vmatpush2.msra.mxu0 0.0
    %611 = vmatprep.mubr.f32.mxu0 0.0
    %612 = vmatmul.mubr.f32.gmra.mxu0 %v500
    %v613 = vpop.f32.mrf.mxu0
    %v614 = vadd.f32 %v496, %v613
    %v615 = vpop.f32.mrf.mxu0
    %616 = vmatprep.mubr.f32.mxu0 0.0
    %617 = vmatmul.mubr.f32.gmra.mxu0 %v503
    %v618 = vpop.f32.mrf.mxu0
    %v619 = vadd.f32 %v496, %v618
    %v620 = vpop.f32.mrf.mxu0
    %621 = vmatprep.mubr.f32.mxu0 0.0
    %622 = vmatmul.mubr.f32.gmra.mxu0 %v506
    %v623 = vpop.f32.mrf.mxu0
    %v624 = vadd.f32 %v496, %v623
    %v625 = vpop.f32.mrf.mxu0
    %626 = vmatprep.mubr.f32.mxu0 0.0
    %627 = vmatmul.mubr.f32.gmra.mxu0 %v509
    %v628 = vpop.f32.mrf.mxu0
    %v629 = vadd.f32 %v496, %v628
    %v630 = vpop.f32.mrf.mxu0
    %631 = vmatprep.mubr.f32.mxu0 0.0
    %632 = vmatmul.mubr.f32.gmra.mxu0 %v512
    %v633 = vpop.f32.mrf.mxu0
    %v634 = vadd.f32 %v496, %v633
    %v635 = vpop.f32.mrf.mxu0
    %636 = vmatprep.mubr.f32.mxu0 0.0
    %637 = vmatmul.mubr.f32.gmra.mxu0 %v515
    %v638 = vpop.f32.mrf.mxu0
    %v639 = vadd.f32 %v496, %v638
    %v640 = vpop.f32.mrf.mxu0
    %641 = vmatprep.mubr.f32.mxu0 0.0
    %642 = vmatmul.mubr.f32.gmra.mxu0 %v518
    %v643 = vpop.f32.mrf.mxu0
    %v644 = vadd.f32 %v496, %v643
    %v645 = vpop.f32.mrf.mxu0
    %646 = vmatprep.mubr.f32.mxu0 0.0
    %647 = vmatmul.mubr.f32.gmra.mxu0 %v521
    %v648 = vpop.f32.mrf.mxu0
    %v649 = vadd.f32 %v496, %v648
    %v650 = vpop.f32.mrf.mxu0
    %651 = vmatprep.mubr.f32.mxu0 0.0
    %652 = vmatmul.mubr.f32.gmra.mxu0 %v524
    %v653 = vpop.f32.mrf.mxu0
    %v654 = vadd.f32 %v496, %v653
    %v655 = vpop.f32.mrf.mxu0
    %656 = vmatprep.mubr.f32.mxu0 0.0
    %657 = vmatmul.mubr.f32.gmra.mxu0 %v527
    %v658 = vpop.f32.mrf.mxu0
    %v659 = vadd.f32 %v496, %v658
    %v660 = vpop.f32.mrf.mxu0
    %661 = vmatprep.mubr.f32.mxu0 0.0
    %662 = vmatmul.mubr.f32.gmra.mxu0 %v530
    %v663 = vpop.f32.mrf.mxu0
    %v664 = vadd.f32 %v496, %v663
    %v665 = vpop.f32.mrf.mxu0
    %666 = vmatprep.mubr.f32.mxu0 0.0
    %667 = vmatmul.mubr.f32.gmra.mxu0 %v533
    %v668 = vpop.f32.mrf.mxu0
    %v669 = vadd.f32 %v496, %v668
    %v670 = vpop.f32.mrf.mxu0
    %671 = vmatprep.mubr.f32.mxu0 0.0
    %672 = vmatmul.mubr.f32.gmra.mxu0 %v536
    %v673 = vpop.f32.mrf.mxu0
    %v674 = vadd.f32 %v496, %v673
    %v675 = vpop.f32.mrf.mxu0
    %676 = vmatprep.mubr.f32.mxu0 0.0
    %677 = vmatmul.mubr.f32.gmra.mxu0 %v539
    %v678 = vpop.f32.mrf.mxu0
    %v679 = vadd.f32 %v496, %v678
    %v680 = vpop.f32.mrf.mxu0
    %681 = vmatprep.mubr.f32.mxu0 0.0
    %682 = vmatmul.mubr.f32.gmra.mxu0 %v542
    %v683 = vpop.f32.mrf.mxu0
    %v684 = vadd.f32 %v496, %v683
    %v685 = vpop.f32.mrf.mxu0
    %686 = vmatprep.mubr.f32.mxu0 0.0
    %687 = vmatmul.mubr.f32.gmra.mxu0 %v545
    %v688 = vpop.f32.mrf.mxu0
    %v689 = vadd.f32 %v496, %v688
    %v690 = vpop.f32.mrf.mxu0
    %691 = vdwg.mxu0
    %v692 = vmax.f32 %v614, 0.0
    %v693 = vmax.f32 %v619, 0.0
    %v694 = vmax.f32 %v624, 0.0
    %v695 = vmax.f32 %v629, 0.0
    %v696 = vmax.f32 %v634, 0.0
    %v697 = vmax.f32 %v639, 0.0
    %v698 = vmax.f32 %v644, 0.0
    %v699 = vmax.f32 %v649, 0.0
    %v700 = vmax.f32 %v654, 0.0
    %v701 = vmax.f32 %v659, 0.0
    %v702 = vmax.f32 %v664, 0.0
    %v703 = vmax.f32 %v669, 0.0
    %v704 = vmax.f32 %v674, 0.0
    %v705 = vmax.f32 %v679, 0.0
    %v706 = vmax.f32 %v684, 0.0
    %v707 = vmax.f32 %v689, 0.0
    %v709 = vsel %vm498, %v471, 0
    %v712 = vsel %vm498, %v472, 0
    %v715 = vsel %vm498, %v473, 0
    %v718 = vsel %vm498, %v474, 0
    %v721 = vsel %vm498, %v475, 0
    %v724 = vsel %vm498, %v476, 0
    %v727 = vsel %vm498, %v477, 0
    %v730 = vsel %vm498, %v478, 0
    %v733 = vsel %vm498, %v479, 0
    %v736 = vsel %vm498, %v480, 0
    %v739 = vsel %vm498, %v481, 0
    %v742 = vsel %vm498, %v482, 0
    %v745 = vsel %vm498, %v483, 0
    %v748 = vsel %vm498, %v484, 0
    %v751 = vsel %vm498, %v485, 0
    %v754 = vsel %vm498, %v486, 0
    %756 = vmatprep.subr.mxu0 0.0
    %757 = vmatpush1.msra.mxu0 0.0
    %758 = vmatprep.subr.mxu0 0.0
    %759 = vmatpush1.msra.mxu0 0.0
    %760 = vmatprep.subr.mxu0 0.0
    %761 = vmatpush1.msra.mxu0 0.0
    %762 = vmatprep.subr.mxu0 0.0
    %763 = vmatpush1.msra.mxu0 0.0
    %764 = vmatprep.subr.mxu0 0.0
    %765 = vmatpush1.msra.mxu0 0.0
    %766 = vmatprep.subr.mxu0 0.0
    %767 = vmatpush1.msra.mxu0 0.0
    %768 = vmatprep.subr.mxu0 0.0
    %769 = vmatpush1.msra.mxu0 0.0
    %770 = vmatprep.subr.mxu0 0.0
    %771 = vmatpush1.msra.mxu0 0.0
    %772 = vmatprep.subr.mxu0 0.0
    %773 = vmatpush1.msra.mxu0 0.0
    %774 = vmatprep.subr.mxu0 0.0
    %775 = vmatpush1.msra.mxu0 0.0
    %776 = vmatprep.subr.mxu0 0.0
    %777 = vmatpush1.msra.mxu0 0.0
    %778 = vmatprep.subr.mxu0 0.0
    %779 = vmatpush1.msra.mxu0 0.0
    %780 = vmatprep.subr.mxu0 0.0
    %781 = vmatpush1.msra.mxu0 %v490
    %782 = vmatprep.subr.mxu0 0.0
    %783 = vmatpush1.msra.mxu0 %v489
    %784 = vmatprep.subr.mxu0 0.0
    %785 = vmatpush1.msra.mxu0 %v488
    %786 = vmatprep.subr.mxu0 0.0
    %787 = vmatpush1.msra.mxu0 %v487
    %788 = vmatprep.subr.mxu0 0.0
    %789 = vmatpush2.msra.mxu0 0.0
    %790 = vmatprep.subr.mxu0 0.0
    %791 = vmatpush2.msra.mxu0 0.0
    %792 = vmatprep.subr.mxu0 0.0
    %793 = vmatpush2.msra.mxu0 0.0
    %794 = vmatprep.subr.mxu0 0.0
    %795 = vmatpush2.msra.mxu0 0.0
    %796 = vmatprep.subr.mxu0 0.0
    %797 = vmatpush2.msra.mxu0 0.0
    %798 = vmatprep.subr.mxu0 0.0
    %799 = vmatpush2.msra.mxu0 0.0
    %800 = vmatprep.subr.mxu0 0.0
    %801 = vmatpush2.msra.mxu0 0.0
    %802 = vmatprep.subr.mxu0 0.0
    %803 = vmatpush2.msra.mxu0 0.0
    %804 = vmatprep.subr.mxu0 0.0
    %805 = vmatpush2.msra.mxu0 0.0
    %806 = vmatprep.subr.mxu0 0.0
    %807 = vmatpush2.msra.mxu0 0.0
    %808 = vmatprep.subr.mxu0 0.0
    %809 = vmatpush2.msra.mxu0 0.0
    %810 = vmatprep.subr.mxu0 0.0
    %811 = vmatpush2.msra.mxu0 0.0
    %812 = vmatprep.subr.mxu0 0.0
    %813 = vmatpush2.msra.mxu0 0.0
    %814 = vmatprep.subr.mxu0 0.0
    %815 = vmatpush2.msra.mxu0 0.0
    %816 = vmatprep.subr.mxu0 0.0
    %817 = vmatpush2.msra.mxu0 0.0
    %818 = vmatprep.subr.mxu0 0.0
    %819 = vmatpush2.msra.mxu0 0.0
    %820 = vmatprep.mubr.f32.mxu0 0.0
    %821 = vmatmul.mubr.f32.gmra.mxu0 %v709
    %v822 = vpop.f32.mrf.mxu0
    %v823 = vadd.f32 %v496, %v822
    %v824 = vpop.f32.mrf.mxu0
    %825 = vmatprep.mubr.f32.mxu0 0.0
    %826 = vmatmul.mubr.f32.gmra.mxu0 %v712
    %v827 = vpop.f32.mrf.mxu0
    %v828 = vadd.f32 %v496, %v827
    %v829 = vpop.f32.mrf.mxu0
    %830 = vmatprep.mubr.f32.mxu0 0.0
    %831 = vmatmul.mubr.f32.gmra.mxu0 %v715
    %v832 = vpop.f32.mrf.mxu0
    %v833 = vadd.f32 %v496, %v832
    %v834 = vpop.f32.mrf.mxu0
    %835 = vmatprep.mubr.f32.mxu0 0.0
    %836 = vmatmul.mubr.f32.gmra.mxu0 %v718
    %v837 = vpop.f32.mrf.mxu0
    %v838 = vadd.f32 %v496, %v837
    %v839 = vpop.f32.mrf.mxu0
    %840 = vmatprep.mubr.f32.mxu0 0.0
    %841 = vmatmul.mubr.f32.gmra.mxu0 %v721
    %v842 = vpop.f32.mrf.mxu0
    %v843 = vadd.f32 %v496, %v842
    %v844 = vpop.f32.mrf.mxu0
    %845 = vmatprep.mubr.f32.mxu0 0.0
    %846 = vmatmul.mubr.f32.gmra.mxu0 %v724
    %v847 = vpop.f32.mrf.mxu0
    %v848 = vadd.f32 %v496, %v847
    %v849 = vpop.f32.mrf.mxu0
    %850 = vmatprep.mubr.f32.mxu0 0.0
    %851 = vmatmul.mubr.f32.gmra.mxu0 %v727
    %v852 = vpop.f32.mrf.mxu0
    %v853 = vadd.f32 %v496, %v852
    %v854 = vpop.f32.mrf.mxu0
    %855 = vmatprep.mubr.f32.mxu0 0.0
    %856 = vmatmul.mubr.f32.gmra.mxu0 %v730
    %v857 = vpop.f32.mrf.mxu0
    %v858 = vadd.f32 %v496, %v857
    %v859 = vpop.f32.mrf.mxu0
    %860 = vmatprep.mubr.f32.mxu0 0.0
    %861 = vmatmul.mubr.f32.gmra.mxu0 %v733
    %v862 = vpop.f32.mrf.mxu0
    %v863 = vadd.f32 %v496, %v862
    %v864 = vpop.f32.mrf.mxu0
    %865 = vmatprep.mubr.f32.mxu0 0.0
    %866 = vmatmul.mubr.f32.gmra.mxu0 %v736
    %v867 = vpop.f32.mrf.mxu0
    %v868 = vadd.f32 %v496, %v867
    %v869 = vpop.f32.mrf.mxu0
    %870 = vmatprep.mubr.f32.mxu0 0.0
    %871 = vmatmul.mubr.f32.gmra.mxu0 %v739
    %v872 = vpop.f32.mrf.mxu0
    %v873 = vadd.f32 %v496, %v872
    %v874 = vpop.f32.mrf.mxu0
    %875 = vmatprep.mubr.f32.mxu0 0.0
    %876 = vmatmul.mubr.f32.gmra.mxu0 %v742
    %v877 = vpop.f32.mrf.mxu0
    %v878 = vadd.f32 %v496, %v877
    %v879 = vpop.f32.mrf.mxu0
    %880 = vmatprep.mubr.f32.mxu0 0.0
    %881 = vmatmul.mubr.f32.gmra.mxu0 %v745
    %v882 = vpop.f32.mrf.mxu0
    %v883 = vadd.f32 %v496, %v882
    %v884 = vpop.f32.mrf.mxu0
    %885 = vmatprep.mubr.f32.mxu0 0.0
    %886 = vmatmul.mubr.f32.gmra.mxu0 %v748
    %v887 = vpop.f32.mrf.mxu0
    %v888 = vadd.f32 %v496, %v887
    %v889 = vpop.f32.mrf.mxu0
    %890 = vmatprep.mubr.f32.mxu0 0.0
    %891 = vmatmul.mubr.f32.gmra.mxu0 %v751
    %v892 = vpop.f32.mrf.mxu0
    %v893 = vadd.f32 %v496, %v892
    %v894 = vpop.f32.mrf.mxu0
    %895 = vmatprep.mubr.f32.mxu0 0.0
    %896 = vmatmul.mubr.f32.gmra.mxu0 %v754
    %v897 = vpop.f32.mrf.mxu0
    %v898 = vadd.f32 %v496, %v897
    %v899 = vpop.f32.mrf.mxu0
    %900 = vdwg.mxu0
    %v901 = vmax.f32 %v823, 0.0
    %v902 = vmax.f32 %v828, 0.0
    %v903 = vmax.f32 %v833, 0.0
    %v904 = vmax.f32 %v838, 0.0
    %v905 = vmax.f32 %v843, 0.0
    %v906 = vmax.f32 %v848, 0.0
    %v907 = vmax.f32 %v853, 0.0
    %v908 = vmax.f32 %v858, 0.0
    %v909 = vmax.f32 %v863, 0.0
    %v910 = vmax.f32 %v868, 0.0
    %v911 = vmax.f32 %v873, 0.0
    %v912 = vmax.f32 %v878, 0.0
    %v913 = vmax.f32 %v883, 0.0
    %v914 = vmax.f32 %v888, 0.0
    %v915 = vmax.f32 %v893, 0.0
    %v916 = vmax.f32 %v898, 0.0
    %v917 = vld [vmem:[%s6] sm:$0xff]
    %v918 = vld [vmem:[%s6 + $0x8] sm:$0xff]
    %v919 = vld [vmem:[%s6 + $0x10] sm:$0xff]
    %v920 = vld [vmem:[%s6 + $0x18] sm:$0xff]
    %v922 = vsel %vm498, %v692, 0
    %v925 = vsel %vm498, %v693, 0
    %v928 = vsel %vm498, %v694, 0
    %v931 = vsel %vm498, %v695, 0
    %v934 = vsel %vm498, %v696, 0
    %v937 = vsel %vm498, %v697, 0
    %v940 = vsel %vm498, %v698, 0
    %v943 = vsel %vm498, %v699, 0
    %v946 = vsel %vm498, %v700, 0
    %v949 = vsel %vm498, %v701, 0
    %v952 = vsel %vm498, %v702, 0
    %v955 = vsel %vm498, %v703, 0
    %v958 = vsel %vm498, %v704, 0
    %v961 = vsel %vm498, %v705, 0
    %v964 = vsel %vm498, %v706, 0
    %v967 = vsel %vm498, %v707, 0
    %969 = vmatprep.subr.mxu0 0.0
    %970 = vmatpush1.msra.mxu0 0.0
    %971 = vmatprep.subr.mxu0 0.0
    %972 = vmatpush1.msra.mxu0 0.0
    %973 = vmatprep.subr.mxu0 0.0
    %974 = vmatpush1.msra.mxu0 0.0
    %975 = vmatprep.subr.mxu0 0.0
    %976 = vmatpush1.msra.mxu0 0.0
    %977 = vmatprep.subr.mxu0 0.0
    %978 = vmatpush1.msra.mxu0 0.0
    %979 = vmatprep.subr.mxu0 0.0
    %980 = vmatpush1.msra.mxu0 0.0
    %981 = vmatprep.subr.mxu0 0.0
    %982 = vmatpush1.msra.mxu0 0.0
    %983 = vmatprep.subr.mxu0 0.0
    %984 = vmatpush1.msra.mxu0 0.0
    %985 = vmatprep.subr.mxu0 0.0
    %986 = vmatpush1.msra.mxu0 0.0
    %987 = vmatprep.subr.mxu0 0.0
    %988 = vmatpush1.msra.mxu0 0.0
    %989 = vmatprep.subr.mxu0 0.0
    %990 = vmatpush1.msra.mxu0 0.0
    %991 = vmatprep.subr.mxu0 0.0
    %992 = vmatpush1.msra.mxu0 0.0
    %993 = vmatprep.subr.mxu0 0.0
    %994 = vmatpush1.msra.mxu0 %v920
    %995 = vmatprep.subr.mxu0 0.0
    %996 = vmatpush1.msra.mxu0 %v919
    %997 = vmatprep.subr.mxu0 0.0
    %998 = vmatpush1.msra.mxu0 %v918
    %999 = vmatprep.subr.mxu0 0.0
    %1000 = vmatpush1.msra.mxu0 %v917
    %1001 = vmatprep.subr.mxu0 0.0
    %1002 = vmatpush2.msra.mxu0 0.0
    %1003 = vmatprep.subr.mxu0 0.0
    %1004 = vmatpush2.msra.mxu0 0.0
    %1005 = vmatprep.subr.mxu0 0.0
    %1006 = vmatpush2.msra.mxu0 0.0
    %1007 = vmatprep.subr.mxu0 0.0
    %1008 = vmatpush2.msra.mxu0 0.0
    %1009 = vmatprep.subr.mxu0 0.0
    %1010 = vmatpush2.msra.mxu0 0.0
    %1011 = vmatprep.subr.mxu0 0.0
    %1012 = vmatpush2.msra.mxu0 0.0
    %1013 = vmatprep.subr.mxu0 0.0
    %1014 = vmatpush2.msra.mxu0 0.0
    %1015 = vmatprep.subr.mxu0 0.0
    %1016 = vmatpush2.msra.mxu0 0.0
    %1017 = vmatprep.subr.mxu0 0.0
    %1018 = vmatpush2.msra.mxu0 0.0
    %1019 = vmatprep.subr.mxu0 0.0
    %1020 = vmatpush2.msra.mxu0 0.0
    %1021 = vmatprep.subr.mxu0 0.0
    %1022 = vmatpush2.msra.mxu0 0.0
    %1023 = vmatprep.subr.mxu0 0.0
    %1024 = vmatpush2.msra.mxu0 0.0
    %1025 = vmatprep.subr.mxu0 0.0
    %1026 = vmatpush2.msra.mxu0 0.0
    %1027 = vmatprep.subr.mxu0 0.0
    %1028 = vmatpush2.msra.mxu0 0.0
    %1029 = vmatprep.subr.mxu0 0.0
    %1030 = vmatpush2.msra.mxu0 0.0
    %1031 = vmatprep.subr.mxu0 0.0
    %1032 = vmatpush2.msra.mxu0 0.0
    %1033 = vmatprep.mubr.f32.mxu0 0.0
    %1034 = vmatmul.mubr.f32.gmra.mxu0 %v922
    %v1035 = vpop.f32.mrf.mxu0
    %v1036 = vadd.f32 0.0, %v1035
    %v1037 = vpop.f32.mrf.mxu0
    %1038 = vmatprep.mubr.f32.mxu0 0.0
    %1039 = vmatmul.mubr.f32.gmra.mxu0 %v925
    %v1040 = vpop.f32.mrf.mxu0
    %v1041 = vadd.f32 0.0, %v1040
    %v1042 = vpop.f32.mrf.mxu0
    %1043 = vmatprep.mubr.f32.mxu0 0.0
    %1044 = vmatmul.mubr.f32.gmra.mxu0 %v928
    %v1045 = vpop.f32.mrf.mxu0
    %v1046 = vadd.f32 0.0, %v1045
    %v1047 = vpop.f32.mrf.mxu0
    %1048 = vmatprep.mubr.f32.mxu0 0.0
    %1049 = vmatmul.mubr.f32.gmra.mxu0 %v931
    %v1050 = vpop.f32.mrf.mxu0
    %v1051 = vadd.f32 0.0, %v1050
    %v1052 = vpop.f32.mrf.mxu0
    %1053 = vmatprep.mubr.f32.mxu0 0.0
    %1054 = vmatmul.mubr.f32.gmra.mxu0 %v934
    %v1055 = vpop.f32.mrf.mxu0
    %v1056 = vadd.f32 0.0, %v1055
    %v1057 = vpop.f32.mrf.mxu0
    %1058 = vmatprep.mubr.f32.mxu0 0.0
    %1059 = vmatmul.mubr.f32.gmra.mxu0 %v937
    %v1060 = vpop.f32.mrf.mxu0
    %v1061 = vadd.f32 0.0, %v1060
    %v1062 = vpop.f32.mrf.mxu0
    %1063 = vmatprep.mubr.f32.mxu0 0.0
    %1064 = vmatmul.mubr.f32.gmra.mxu0 %v940
    %v1065 = vpop.f32.mrf.mxu0
    %v1066 = vadd.f32 0.0, %v1065
    %v1067 = vpop.f32.mrf.mxu0
    %1068 = vmatprep.mubr.f32.mxu0 0.0
    %1069 = vmatmul.mubr.f32.gmra.mxu0 %v943
    %v1070 = vpop.f32.mrf.mxu0
    %v1071 = vadd.f32 0.0, %v1070
    %v1072 = vpop.f32.mrf.mxu0
    %1073 = vmatprep.mubr.f32.mxu0 0.0
    %1074 = vmatmul.mubr.f32.gmra.mxu0 %v946
    %v1075 = vpop.f32.mrf.mxu0
    %v1076 = vadd.f32 0.0, %v1075
    %v1077 = vpop.f32.mrf.mxu0
    %1078 = vmatprep.mubr.f32.mxu0 0.0
    %1079 = vmatmul.mubr.f32.gmra.mxu0 %v949
    %v1080 = vpop.f32.mrf.mxu0
    %v1081 = vadd.f32 0.0, %v1080
    %v1082 = vpop.f32.mrf.mxu0
    %1083 = vmatprep.mubr.f32.mxu0 0.0
    %1084 = vmatmul.mubr.f32.gmra.mxu0 %v952
    %v1085 = vpop.f32.mrf.mxu0
    %v1086 = vadd.f32 0.0, %v1085
    %v1087 = vpop.f32.mrf.mxu0
    %1088 = vmatprep.mubr.f32.mxu0 0.0
    %1089 = vmatmul.mubr.f32.gmra.mxu0 %v955
    %v1090 = vpop.f32.mrf.mxu0
    %v1091 = vadd.f32 0.0, %v1090
    %v1092 = vpop.f32.mrf.mxu0
    %1093 = vmatprep.mubr.f32.mxu0 0.0
    %1094 = vmatmul.mubr.f32.gmra.mxu0 %v958
    %v1095 = vpop.f32.mrf.mxu0
    %v1096 = vadd.f32 0.0, %v1095
    %v1097 = vpop.f32.mrf.mxu0
    %1098 = vmatprep.mubr.f32.mxu0 0.0
    %1099 = vmatmul.mubr.f32.gmra.mxu0 %v961
    %v1100 = vpop.f32.mrf.mxu0
    %v1101 = vadd.f32 0.0, %v1100
    %v1102 = vpop.f32.mrf.mxu0
    %1103 = vmatprep.mubr.f32.mxu0 0.0
    %1104 = vmatmul.mubr.f32.gmra.mxu0 %v964
    %v1105 = vpop.f32.mrf.mxu0
    %v1106 = vadd.f32 0.0, %v1105
    %v1107 = vpop.f32.mrf.mxu0
    %1108 = vmatprep.mubr.f32.mxu0 0.0
    %1109 = vmatmul.mubr.f32.gmra.mxu0 %v967
    %v1110 = vpop.f32.mrf.mxu0
    %v1111 = vadd.f32 0.0, %v1110
    %v1112 = vpop.f32.mrf.mxu0
    %1113 = vdwg.mxu0
    %v1114 = vmul.f32 %v1036, %v901
    %v1115 = vmul.f32 %v1041, %v902
    %v1116 = vmul.f32 %v1046, %v903
    %v1117 = vmul.f32 %v1051, %v904
    %v1118 = vmul.f32 %v1056, %v905
    %v1119 = vmul.f32 %v1061, %v906
    %v1120 = vmul.f32 %v1066, %v907
    %v1121 = vmul.f32 %v1071, %v908
    %v1122 = vmul.f32 %v1076, %v909
    %v1123 = vmul.f32 %v1081, %v910
    %v1124 = vmul.f32 %v1086, %v911
    %v1125 = vmul.f32 %v1091, %v912
    %v1126 = vmul.f32 %v1096, %v913
    %v1127 = vmul.f32 %v1101, %v914
    %v1128 = vmul.f32 %v1106, %v915
    %v1129 = vmul.f32 %v1111, %v916
    %v1131 = vsel %vm498, 1.0, 0
    %v1134 = vsel %vm498, %v1114, 0
    %v1137 = vsel %vm498, %v1115, 0
    %v1140 = vsel %vm498, %v1116, 0
    %v1143 = vsel %vm498, %v1117, 0
    %v1146 = vsel %vm498, %v1118, 0
    %v1149 = vsel %vm498, %v1119, 0
    %v1152 = vsel %vm498, %v1120, 0
    %v1155 = vsel %vm498, %v1121, 0
    %v1158 = vsel %vm498, %v1122, 0
    %v1161 = vsel %vm498, %v1123, 0
    %v1164 = vsel %vm498, %v1124, 0
    %v1167 = vsel %vm498, %v1125, 0
    %v1170 = vsel %vm498, %v1126, 0
    %v1173 = vsel %vm498, %v1127, 0
    %v1176 = vsel %vm498, %v1128, 0
    %v1179 = vsel %vm498, %v1129, 0
    %1181 = vmatprep.subr.mxu0 0.0
    %1182 = vmatpush1.xpose.msra.mxu0 %v1179
    %1183 = vmatprep.subr.mxu0 0.0
    %1184 = vmatpush1.xpose.msra.mxu0 %v1176
    %1185 = vmatprep.subr.mxu0 0.0
    %1186 = vmatpush1.xpose.msra.mxu0 %v1173
    %1187 = vmatprep.subr.mxu0 0.0
    %1188 = vmatpush1.xpose.msra.mxu0 %v1170
    %1189 = vmatprep.subr.mxu0 0.0
    %1190 = vmatpush1.xpose.msra.mxu0 %v1167
    %1191 = vmatprep.subr.mxu0 0.0
    %1192 = vmatpush1.xpose.msra.mxu0 %v1164
    %1193 = vmatprep.subr.mxu0 0.0
    %1194 = vmatpush1.xpose.msra.mxu0 %v1161
    %1195 = vmatprep.subr.mxu0 0.0
    %1196 = vmatpush1.xpose.msra.mxu0 %v1158
    %1197 = vmatprep.subr.mxu0 0.0
    %1198 = vmatpush1.xpose.msra.mxu0 %v1155
    %1199 = vmatprep.subr.mxu0 0.0
    %1200 = vmatpush1.xpose.msra.mxu0 %v1152
    %1201 = vmatprep.subr.mxu0 0.0
    %1202 = vmatpush1.xpose.msra.mxu0 %v1149
    %1203 = vmatprep.subr.mxu0 0.0
    %1204 = vmatpush1.xpose.msra.mxu0 %v1146
    %1205 = vmatprep.subr.mxu0 0.0
    %1206 = vmatpush1.xpose.msra.mxu0 %v1143
    %1207 = vmatprep.subr.mxu0 0.0
    %1208 = vmatpush1.xpose.msra.mxu0 %v1140
    %1209 = vmatprep.subr.mxu0 0.0
    %1210 = vmatpush1.xpose.msra.mxu0 %v1137
    %1211 = vmatprep.subr.mxu0 0.0
    %1212 = vmatpush1.xpose.msra.mxu0 %v1134
    %1213 = vmatprep.subr.mxu0 0.0
    %1214 = vmatpush2.xpose.msra.mxu0 0.0
    %1215 = vmatprep.subr.mxu0 0.0
    %1216 = vmatpush2.xpose.msra.mxu0 0.0
    %1217 = vmatprep.subr.mxu0 0.0
    %1218 = vmatpush2.xpose.msra.mxu0 0.0
    %1219 = vmatprep.subr.mxu0 0.0
    %1220 = vmatpush2.xpose.msra.mxu0 0.0
    %1221 = vmatprep.subr.mxu0 0.0
    %1222 = vmatpush2.xpose.msra.mxu0 0.0
    %1223 = vmatprep.subr.mxu0 0.0
    %1224 = vmatpush2.xpose.msra.mxu0 0.0
    %1225 = vmatprep.subr.mxu0 0.0
    %1226 = vmatpush2.xpose.msra.mxu0 0.0
    %1227 = vmatprep.subr.mxu0 0.0
    %1228 = vmatpush2.xpose.msra.mxu0 0.0
    %1229 = vmatprep.subr.mxu0 0.0
    %1230 = vmatpush2.xpose.msra.mxu0 0.0
    %1231 = vmatprep.subr.mxu0 0.0
    %1232 = vmatpush2.xpose.msra.mxu0 0.0
    %1233 = vmatprep.subr.mxu0 0.0
    %1234 = vmatpush2.xpose.msra.mxu0 0.0
    %1235 = vmatprep.subr.mxu0 0.0
    %1236 = vmatpush2.xpose.msra.mxu0 0.0
    %1237 = vmatprep.subr.mxu0 0.0
    %1238 = vmatpush2.xpose.msra.mxu0 0.0
    %1239 = vmatprep.subr.mxu0 0.0
    %1240 = vmatpush2.xpose.msra.mxu0 0.0
    %1241 = vmatprep.subr.mxu0 0.0
    %1242 = vmatpush2.xpose.msra.mxu0 0.0
    %1243 = vmatprep.subr.mxu0 0.0
    %1244 = vmatpush2.xpose.msra.mxu0 0.0
    %1245 = vmatprep.mubr.f32.mxu0 0.0
    %1246 = vmatmul.mubr.f32.gmra.mxu0 %v1131
    %v1247 = vpop.f32.mrf.mxu0
    %v1248 = vadd.f32 0.0, %v1247
    %v1249 = vpop.f32.mrf.mxu0
    %1250 = vdwg.mxu0
    %1251 = vst [vmem:[#allocation2] sm:$0x1] %v1248
    // Predicated region
    $region30: #{tpu_custom_call.1} parent=1 // pred_check
      _
    $region31: #{tpu_custom_call.1} parent=1 // pred_check_branch
      %1253 = sbr.rel (0) target = $region33
    $region32: #{tpu_custom_call.1} parent=1 // pred_region
      %s1255 = ssub.s32 16, 16
      %1256 = vsyncadd [#allocation3], %s1255
      %s1258 = sshll.u32 [#allocation2], 4
      %s1259 = int_to_ptr.vmem [resolvable:$true] %s1258
      %1261 = dma.vmem_to_hbm [thread:$0]  %s1259, 16, %s7, [#allocation3]
    $region33: #{tpu_custom_call.1} parent=1 // pred_fallthru
      _
    // Predicated region
    $region34: #{tpu_custom_call.1} parent=1 // pred_check
      _
    $region35: #{tpu_custom_call.1} parent=1 // pred_check_branch
      %1263 = sbr.rel (0) target = $region37
    $region36: #{tpu_custom_call.1} parent=1 // pred_region
      %1264 = dma.done [#allocation3], 16
    $region37: #{tpu_custom_call.1} parent=1 // pred_fallthru
      _
    %1265 = vsyncpa [#allocation3], 1

</llo_original>
